<compile_context>
chip_gen: v7x
topology: tpu7x:2x2x1
jax: 0.10.0
libtpu: 0.0.40
codegen_flags: <defaults>
</compile_context>

<pallas_src>
import math

import jax
import jax.numpy as jnp
from jax.experimental import pallas as pl
from jax.experimental.pallas import tpu as pltpu


def _adapter_mlp_kernel(x_ref, wa_ref, ba_ref, wb_ref, bb_ref, o_ref):
    """Fused Linear -> SiLU -> Linear on one (tm, in_features) tile of rows.

    x_ref : (tm, in_f)      tile of flattened input rows
    wa_ref: (in_f, hidden)  conv_A.weight, pre-transposed
    ba_ref: (1, hidden)     conv_A.bias
    wb_ref: (hidden, out_f) conv_B.weight, pre-transposed
    bb_ref: (1, out_f)      conv_B.bias
    o_ref : (tm, out_f)
    """
    x = x_ref[...].astype(jnp.float32)

    # conv_A: (tm, in_f) @ (in_f, hidden) -> (tm, hidden)  [MXU, f32 accum]
    h = jnp.dot(x, wa_ref[...], preferred_element_type=jnp.float32) + ba_ref[...]

    # SiLU(h) = h * sigmoid(h); exp goes to the EUP slot (cheap).
    act = h * (1.0 / (1.0 + jnp.exp(-h)))

    # conv_B: (tm, hidden) @ (hidden, out_f) -> (tm, out_f)
    out = jnp.dot(act, wb_ref[...], preferred_element_type=jnp.float32) + bb_ref[...]

    o_ref[...] = out.astype(o_ref.dtype)


def adapter_mlp(x, w_a, b_a, w_b, b_b, *, block_rows=1024):
    """AdapterMLP forward. Weights are given in PyTorch nn.Linear layout:

    w_a: (hidden, in_features),  b_a: (hidden,)
    w_b: (out_features, hidden), b_b: (out_features,)
    """
    assert block_rows % 8 == 0, "block_rows must respect the (8,128) sublane tile"

    orig_shape = x.shape
    in_f = orig_shape[-1]
    hidden, in_f_w = w_a.shape
    out_f, hidden_w = w_b.shape
    assert in_f_w == in_f and hidden_w == hidden
    assert b_a.shape == (hidden,) and b_b.shape == (out_f,)

    rows = 1
    for s in orig_shape[:-1]:
        rows *= s
    x2d = x.reshape(rows, in_f)

    # Pre-transpose / pre-cast parameters once (they stay VMEM-resident;
    # constant index_map across the grid, no per-step casts or broadcasts).
    wa_t = jnp.asarray(w_a.T, dtype=jnp.float32)        # (in_f, hidden)
    wb_t = jnp.asarray(w_b.T, dtype=jnp.float32)        # (hidden, out_f)
    ba2d = jnp.asarray(b_a, dtype=jnp.float32).reshape(1, hidden)
    bb2d = jnp.asarray(b_b, dtype=jnp.float32).reshape(1, out_f)

    # Row tile: the biggest tile that still gives a multi-step grid for big
    # inputs; for small inputs a single full-extent block (no padding copy —
    # Pallas masks the partial last block when rows % tm != 0).
    tm = rows if rows <= block_rows else block_rows
    grid = (pl.cdiv(rows, tm),)

    out2d = pl.pallas_call(
        _adapter_mlp_kernel,
        out_shape=jax.ShapeDtypeStruct((rows, out_f), x.dtype),
        grid_spec=pltpu.PrefetchScalarGridSpec(
            num_scalar_prefetch=0,
            grid=grid,
            in_specs=[
                pl.BlockSpec((tm, in_f), lambda i: (i, 0)),      # x rows tile
                pl.BlockSpec((in_f, hidden), lambda i: (0, 0)),  # W_A^T (resident)
                pl.BlockSpec((1, hidden), lambda i: (0, 0)),     # b_A
                pl.BlockSpec((hidden, out_f), lambda i: (0, 0)), # W_B^T (resident)
                pl.BlockSpec((1, out_f), lambda i: (0, 0)),      # b_B
            ],
            out_specs=pl.BlockSpec((tm, out_f), lambda i: (i, 0)),
        ),
        compiler_params=pltpu.CompilerParams(
            dimension_semantics=("parallel",),       # megacore-shard rows on v7x
            vmem_limit_bytes=48 * 1024 * 1024,       # headroom even on v7x's 64 MiB
        ),
    )(x2d, wa_t, ba2d, wb_t, bb2d)

    return out2d.reshape(orig_shape[:-1] + (out_f,))


def adapter_mlp_ref(x, w_a, b_a, w_b, b_b):
    """Pure-JAX reference matching the PyTorch module forward."""
    h = x @ w_a.T + b_a
    act = h * jax.nn.sigmoid(h)
    return act @ w_b.T + b_b


if __name__ == "__main__":
    key = jax.random.PRNGKey(0)
    batch, seq = 2, 8
    in_features, hidden_dim, out_features = 32, 128, 32

    k_x, k_a, k_b = jax.random.split(key, 3)
    x = jax.random.normal(k_x, (batch, seq, in_features), dtype=jnp.float32)

    # Deterministic parameter init matching the PyTorch module:
    # xavier_uniform_ weights, zero biases.
    lim_a = math.sqrt(6.0 / (in_features + hidden_dim))
    w_a = jax.random.uniform(k_a, (hidden_dim, in_features),
                             minval=-lim_a, maxval=lim_a, dtype=jnp.float32)
    b_a = jnp.zeros((hidden_dim,), dtype=jnp.float32)

    lim_b = math.sqrt(6.0 / (hidden_dim + out_features))
    w_b = jax.random.uniform(k_b, (out_features, hidden_dim),
                             minval=-lim_b, maxval=lim_b, dtype=jnp.float32)
    b_b = jnp.zeros((out_features,), dtype=jnp.float32)

    out = adapter_mlp(x, w_a, b_a, w_b, b_b)
    out = jax.block_until_ready(out)

    ref = adapter_mlp_ref(x, w_a, b_a, w_b, b_b)
    assert out.shape == (batch, seq, out_features), (out.shape,)
    # Loose-ish tolerance: XLA's default f32 dot precision on TPU may differ
    # from the in-kernel MXU accumulation path (bf16-pass vs full f32).
    assert jnp.allclose(out, ref, atol=2e-2, rtol=2e-2), "mismatch vs reference"

    print("KERNEL_OK")
</pallas_src>

<mosaic_0001>
module attributes {stable_mosaic.version = 11 : i64} {
  func.func @_adapter_mlp_kernel(%arg0: i32, %arg1: memref<16x32xf32, #tpu.memory_space<vmem>>, %arg2: memref<32x128xf32, #tpu.memory_space<vmem>>, %arg3: memref<1x128xf32, #tpu.memory_space<vmem>>, %arg4: memref<128x32xf32, #tpu.memory_space<vmem>>, %arg5: memref<1x32xf32, #tpu.memory_space<vmem>>, %arg6: memref<16x32xf32, #tpu.memory_space<vmem>>) attributes {dimension_semantics = [#tpu.dimension_semantics<parallel>], iteration_bounds = array<i64: 1>, scalar_prefetch = 0 : i64, scratch_operands = 0 : i64, tpu.core_type = #tpu.core_type<tc>, window_params = [{transform_indices = @transform_0, window_bounds = array<i64: 16, 32>}, {pipeline_mode = #tpu.pipeline_mode<synchronous>, transform_indices = @transform_1, window_bounds = array<i64: 32, 128>}, {pipeline_mode = #tpu.pipeline_mode<synchronous>, transform_indices = @transform_2, window_bounds = array<i64: 1, 128>}, {pipeline_mode = #tpu.pipeline_mode<synchronous>, transform_indices = @transform_3, window_bounds = array<i64: 128, 32>}, {pipeline_mode = #tpu.pipeline_mode<synchronous>, transform_indices = @transform_4, window_bounds = array<i64: 1, 32>}, {transform_indices = @transform_5, window_bounds = array<i64: 16, 32>}]} {
    %c0 = arith.constant 0 : index
    %c0_0 = arith.constant 0 : index
    %0 = vector.load %arg1[%c0, %c0_0] : memref<16x32xf32, #tpu.memory_space<vmem>>, vector<16x32xf32>
    %c0_1 = arith.constant 0 : index
    %c0_2 = arith.constant 0 : index
    %1 = vector.load %arg2[%c0_1, %c0_2] : memref<32x128xf32, #tpu.memory_space<vmem>>, vector<32x128xf32>
    %cst = arith.constant dense<0.000000e+00> : vector<16x128xf32>
    %2 = tpu.matmul %0, %1, %cst {dimension_numbers = #tpu.dot_dimension_numbers<[1], [0], [0], [1], [0, 0, 1, 1], [], []>} : vector<16x32xf32>, vector<32x128xf32>, vector<16x128xf32> -> vector<16x128xf32>
    %c0_3 = arith.constant 0 : index
    %c0_4 = arith.constant 0 : index
    %3 = vector.load %arg3[%c0_3, %c0_4] : memref<1x128xf32, #tpu.memory_space<vmem>>, vector<1x128xf32>
    %4 = vector.broadcast %3 : vector<1x128xf32> to vector<16x128xf32>
    %5 = arith.addf %2, %4 : vector<16x128xf32>
    %cst_5 = arith.constant 0.000000e+00 : f32
    %6 = vector.broadcast %cst_5 : f32 to vector<16x128xf32>
    %7 = arith.subf %6, %5 : vector<16x128xf32>
    %8 = math.exp %7 : vector<16x128xf32>
    %cst_6 = arith.constant 1.000000e+00 : f32
    %9 = vector.broadcast %cst_6 : f32 to vector<16x128xf32>
    %10 = arith.addf %9, %8 : vector<16x128xf32>
    %cst_7 = arith.constant 1.000000e+00 : f32
    %11 = vector.broadcast %cst_7 : f32 to vector<16x128xf32>
    %12 = arith.divf %11, %10 : vector<16x128xf32>
    %13 = arith.mulf %5, %12 : vector<16x128xf32>
    %c0_8 = arith.constant 0 : index
    %c0_9 = arith.constant 0 : index
    %14 = vector.load %arg4[%c0_8, %c0_9] : memref<128x32xf32, #tpu.memory_space<vmem>>, vector<128x32xf32>
    %cst_10 = arith.constant dense<0.000000e+00> : vector<16x32xf32>
    %15 = tpu.matmul %13, %14, %cst_10 {dimension_numbers = #tpu.dot_dimension_numbers<[1], [0], [0], [1], [0, 0, 1, 1], [], []>} : vector<16x128xf32>, vector<128x32xf32>, vector<16x32xf32> -> vector<16x32xf32>
    %c0_11 = arith.constant 0 : index
    %c0_12 = arith.constant 0 : index
    %16 = vector.load %arg5[%c0_11, %c0_12] : memref<1x32xf32, #tpu.memory_space<vmem>>, vector<1x32xf32>
    %17 = vector.broadcast %16 : vector<1x32xf32> to vector<16x32xf32>
    %18 = arith.addf %15, %17 : vector<16x32xf32>
    %c0_13 = arith.constant 0 : index
    %c0_14 = arith.constant 0 : index
    %19 = vector.load %arg6[%c0_13, %c0_14] : memref<16x32xf32, #tpu.memory_space<vmem>>, vector<16x32xf32>
    tpu.vector_store %arg6[%c0_13, %c0_14], %18 {strides = array<i32>} : memref<16x32xf32, #tpu.memory_space<vmem>>, vector<16x32xf32>,
    return
  }
  func.func @transform_0(%arg0: i32) -> (i32, i32) {
    %c0_i32 = arith.constant 0 : i32
    %c0_i32_0 = arith.constant 0 : i32
    return %arg0, %c0_i32 : i32, i32
  }
  func.func @transform_1(%arg0: i32) -> (i32, i32) {
    %c0_i32 = arith.constant 0 : i32
    %c0_i32_0 = arith.constant 0 : i32
    %c0_i32_1 = arith.constant 0 : i32
    return %c0_i32, %c0_i32_0 : i32, i32
  }
  func.func @transform_2(%arg0: i32) -> (i32, i32) {
    %c0_i32 = arith.constant 0 : i32
    %c0_i32_0 = arith.constant 0 : i32
    %c0_i32_1 = arith.constant 0 : i32
    return %c0_i32, %c0_i32_0 : i32, i32
  }
  func.func @transform_3(%arg0: i32) -> (i32, i32) {
    %c0_i32 = arith.constant 0 : i32
    %c0_i32_0 = arith.constant 0 : i32
    %c0_i32_1 = arith.constant 0 : i32
    return %c0_i32, %c0_i32_0 : i32, i32
  }
  func.func @transform_4(%arg0: i32) -> (i32, i32) {
    %c0_i32 = arith.constant 0 : i32
    %c0_i32_0 = arith.constant 0 : i32
    %c0_i32_1 = arith.constant 0 : i32
    return %c0_i32, %c0_i32_0 : i32, i32
  }
  func.func @transform_5(%arg0: i32) -> (i32, i32) {
    %c0_i32 = arith.constant 0 : i32
    %c0_i32_0 = arith.constant 0 : i32
    return %arg0, %c0_i32 : i32, i32
  }
}

</mosaic_0001>

<llo_original>
// kernel: tpu_custom_call.1
$region0: #{tpu_custom_call.1}
  #allocation0 [shape = 'u32[]', space=smem, size = 0x4, offset = 0x4, fixed_abs, tag = 'smem constant byte address 0x4 - core index']
  #allocation1 [shape = 'u32[144,128]{1,0:T(1,128)}', space=vmem, size = 0x12000, scoped, tag = 'internal scratch']
  %s0 = inlined_call_operand.vmem [shape: f32[16,32], index: 0, kind: input, shape index: {}]
  %s1 = inlined_call_operand.vmem [shape: f32[32,128], index: 1, kind: input, shape index: {}]
  %s2 = inlined_call_operand.vmem [shape: f32[1,128], index: 2, kind: input, shape index: {}]
  %s3 = inlined_call_operand.vmem [shape: f32[128,32], index: 3, kind: input, shape index: {}]
  %s4 = inlined_call_operand.vmem [shape: f32[1,32], index: 4, kind: input, shape index: {}]
  %s5 = inlined_call_operand.hbm [shape: f32[16,32], index: 5, kind: output, shape index: {}]
  %s6 = sld [smem:[#allocation0]]
  $region30: #{tpu_custom_call.1} parent=0
    _
  %s8 = ssub.s32 1, %s6
  %s9 = scalar_select 0, %s8, %s6
  $region1: #{tpu_custom_call.1} parent=0
    #allocation2 [shape = 'u8[8192]{0}', space=vmem, size = 0x2000, scoped, tag = 'output window, operand 0, single buffered']
    #allocation3 [shape = 's32[1]{0}', space=sflag, size = 0x4, scoped, tag = 'scoped memory for tpu_custom_call.1']
    %10 = vsyncpa [#allocation3], 0
    // Predicated region
    $region2: #{tpu_custom_call.1} parent=1 // pred_check
      _
    $region3: #{tpu_custom_call.1} parent=1 // pred_check_branch
      %12 = sbr.rel (0) target = $region5
    $region4: #{tpu_custom_call.1} parent=1 // pred_region
      _
    $region5: #{tpu_custom_call.1} parent=1 // pred_fallthru
      _
    // Predicated region
    $region6: #{tpu_custom_call.1} parent=1 // pred_check
      _
    $region7: #{tpu_custom_call.1} parent=1 // pred_check_branch
      %14 = sbr.rel (0) target = $region9
    $region8: #{tpu_custom_call.1} parent=1 // pred_region
      _
    $region9: #{tpu_custom_call.1} parent=1 // pred_fallthru
      _
    // Predicated region
    $region10: #{tpu_custom_call.1} parent=1 // pred_check
      _
    $region11: #{tpu_custom_call.1} parent=1 // pred_check_branch
      %16 = sbr.rel (0) target = $region13
    $region12: #{tpu_custom_call.1} parent=1 // pred_region
      _
    $region13: #{tpu_custom_call.1} parent=1 // pred_fallthru
      _
    // Predicated region
    $region14: #{tpu_custom_call.1} parent=1 // pred_check
      _
    $region15: #{tpu_custom_call.1} parent=1 // pred_check_branch
      %18 = sbr.rel (0) target = $region17
    $region16: #{tpu_custom_call.1} parent=1 // pred_region
      _
    $region17: #{tpu_custom_call.1} parent=1 // pred_fallthru
      _
    // Predicated region
    $region18: #{tpu_custom_call.1} parent=1 // pred_check
      _
    $region19: #{tpu_custom_call.1} parent=1 // pred_check_branch
      %20 = sbr.rel (0) target = $region21
    $region20: #{tpu_custom_call.1} parent=1 // pred_region
      _
    $region21: #{tpu_custom_call.1} parent=1 // pred_fallthru
      _
    %v21 = vld [vmem:[%s0] sm:$0xff]
    %v22 = vld [vmem:[%s0 + $0x8] sm:$0xff]
    %v23 = vld [vmem:[%s1] sm:$0xff]
    %v24 = vld [vmem:[%s1 + $0x8] sm:$0xff]
    %v25 = vld [vmem:[%s1 + $0x10] sm:$0xff]
    %v26 = vld [vmem:[%s1 + $0x18] sm:$0xff]
    %v27 = vld [vmem:[%s2] sm:$0x1]
    %v29 = vlaneseq
    %v30 = vshrl.u32 %v29, 7
    %v31 = vsub.s32 0, %v30
    %v32 = vrot.slane %v27, %v31
    %vm34 = vcmask 261120
    %v36 = vsel %vm34, %v21, 0
    %v39 = vsel %vm34, %v22, 0
    %41 = vmatprep.subr.mxu0 0.0
    %42 = vmatpush1.msra.mxu0 %v23
    %43 = vmatprep.subr.mxu0 0.0
    %44 = vmatpush1.msra.mxu0 %v24
    %45 = vmatprep.subr.mxu0 0.0
    %46 = vmatpush1.msra.mxu0 %v25
    %47 = vmatprep.subr.mxu0 0.0
    %48 = vmatpush1.msra.mxu0 %v26
    %49 = vmatprep.subr.mxu0 0.0
    %50 = vmatpush1.msra.mxu0 0.0
    %51 = vmatprep.subr.mxu0 0.0
    %52 = vmatpush1.msra.mxu0 0.0
    %53 = vmatprep.subr.mxu0 0.0
    %54 = vmatpush1.msra.mxu0 0.0
    %55 = vmatprep.subr.mxu0 0.0
    %56 = vmatpush1.msra.mxu0 0.0
    %57 = vmatprep.subr.mxu0 0.0
    %58 = vmatpush1.msra.mxu0 0.0
    %59 = vmatprep.subr.mxu0 0.0
    %60 = vmatpush1.msra.mxu0 0.0
    %61 = vmatprep.subr.mxu0 0.0
    %62 = vmatpush1.msra.mxu0 0.0
    %63 = vmatprep.subr.mxu0 0.0
    %64 = vmatpush1.msra.mxu0 0.0
    %65 = vmatprep.subr.mxu0 0.0
    %66 = vmatpush1.msra.mxu0 0.0
    %67 = vmatprep.subr.mxu0 0.0
    %68 = vmatpush1.msra.mxu0 0.0
    %69 = vmatprep.subr.mxu0 0.0
    %70 = vmatpush1.msra.mxu0 0.0
    %71 = vmatprep.subr.mxu0 0.0
    %72 = vmatpush1.msra.mxu0 0.0
    %73 = vmatprep.subr.mxu0 0.0
    %74 = vmatpush1.msra.mxu0 0.0
    %75 = vmatprep.subr.mxu0 0.0
    %76 = vmatpush1.msra.mxu0 0.0
    %77 = vmatprep.subr.mxu0 0.0
    %78 = vmatpush1.msra.mxu0 0.0
    %79 = vmatprep.subr.mxu0 0.0
    %80 = vmatpush1.msra.mxu0 0.0
    %81 = vmatprep.subr.mxu0 0.0
    %82 = vmatpush1.msra.mxu0 0.0
    %83 = vmatprep.subr.mxu0 0.0
    %84 = vmatpush1.msra.mxu0 0.0
    %85 = vmatprep.subr.mxu0 0.0
    %86 = vmatpush1.msra.mxu0 0.0
    %87 = vmatprep.subr.mxu0 0.0
    %88 = vmatpush1.msra.mxu0 0.0
    %89 = vmatprep.subr.mxu0 0.0
    %90 = vmatpush1.msra.mxu0 0.0
    %91 = vmatprep.subr.mxu0 0.0
    %92 = vmatpush1.msra.mxu0 0.0
    %93 = vmatprep.subr.mxu0 0.0
    %94 = vmatpush1.msra.mxu0 0.0
    %95 = vmatprep.subr.mxu0 0.0
    %96 = vmatpush1.msra.mxu0 0.0
    %97 = vmatprep.subr.mxu0 0.0
    %98 = vmatpush1.msra.mxu0 0.0
    %99 = vmatprep.subr.mxu0 0.0
    %100 = vmatpush1.msra.mxu0 0.0
    %101 = vmatprep.subr.mxu0 0.0
    %102 = vmatpush1.msra.mxu0 0.0
    %103 = vmatprep.subr.mxu0 0.0
    %104 = vmatpush1.msra.mxu0 0.0
    %105 = vmatprep.mubr.f32.mxu0 0.0
    %106 = vmatmul.mubr.f32.gmra.mrb[0].mxu0 %v36
    %v107 = vpop.f32.mrb[0].mxu0
    %v108 = vadd.f32 %v32, %v107
    %v109 = vpop.f32.mrb[0].mxu0
    %110 = vmatprep.mubr.f32.mxu0 0.0
    %111 = vmatmul.mubr.f32.gmra.mrb[0].mxu0 %v39
    %v112 = vpop.f32.mrb[0].mxu0
    %v113 = vadd.f32 %v32, %v112
    %v114 = vpop.f32.mrb[0].mxu0
    %115 = vdwg.mxu0
    %v116 = vsub.f32 0.0, %v108
    %v117 = vsub.f32 0.0, %v113
    %v118 = vmul.f32 %v116, 1.442695
    %v119 = vpow.pop %v118
    %v120 = vmul.f32 %v117, 1.442695
    %v121 = vpow.pop %v120
    %v122 = vadd.f32 %v119, 1.0
    %v123 = vadd.f32 %v121, 1.0
    %v124 = vrcp.pop %v122
    %v125 = vmul.f32 1.0, %v124
    %v126 = vrcp.pop %v123
    %v127 = vmul.f32 1.0, %v126
    %v128 = vmul.f32 %v108, %v125
    %v129 = vmul.f32 %v113, %v127
    %v130 = vld [vmem:[%s3] sm:$0xff]
    %v131 = vld [vmem:[%s3 + $0x8] sm:$0xff]
    %v132 = vld [vmem:[%s3 + $0x10] sm:$0xff]
    %v133 = vld [vmem:[%s3 + $0x18] sm:$0xff]
    %v134 = vld [vmem:[%s3 + $0x20] sm:$0xff]
    %v135 = vld [vmem:[%s3 + $0x28] sm:$0xff]
    %v136 = vld [vmem:[%s3 + $0x30] sm:$0xff]
    %v137 = vld [vmem:[%s3 + $0x38] sm:$0xff]
    %v138 = vld [vmem:[%s3 + $0x40] sm:$0xff]
    %v139 = vld [vmem:[%s3 + $0x48] sm:$0xff]
    %v140 = vld [vmem:[%s3 + $0x50] sm:$0xff]
    %v141 = vld [vmem:[%s3 + $0x58] sm:$0xff]
    %v142 = vld [vmem:[%s3 + $0x60] sm:$0xff]
    %v143 = vld [vmem:[%s3 + $0x68] sm:$0xff]
    %v144 = vld [vmem:[%s3 + $0x70] sm:$0xff]
    %v145 = vld [vmem:[%s3 + $0x78] sm:$0xff]
    %v146 = vld [vmem:[%s4] sm:$0x1]
    %v148 = vlaneseq
    %v149 = vshrl.u32 %v148, 7
    %v150 = vsub.s32 0, %v149
    %v151 = vrot.slane %v146, %v150
    %153 = vmatprep.subr.mxu0 0.0
    %154 = vmatpush1.msra.mxu0 %v130
    %155 = vmatprep.subr.mxu0 0.0
    %156 = vmatpush1.msra.mxu0 %v131
    %157 = vmatprep.subr.mxu0 0.0
    %158 = vmatpush1.msra.mxu0 %v132
    %159 = vmatprep.subr.mxu0 0.0
    %160 = vmatpush1.msra.mxu0 %v133
    %161 = vmatprep.subr.mxu0 0.0
    %162 = vmatpush1.msra.mxu0 %v134
    %163 = vmatprep.subr.mxu0 0.0
    %164 = vmatpush1.msra.mxu0 %v135
    %165 = vmatprep.subr.mxu0 0.0
    %166 = vmatpush1.msra.mxu0 %v136
    %167 = vmatprep.subr.mxu0 0.0
    %168 = vmatpush1.msra.mxu0 %v137
    %169 = vmatprep.subr.mxu0 0.0
    %170 = vmatpush1.msra.mxu0 %v138
    %171 = vmatprep.subr.mxu0 0.0
    %172 = vmatpush1.msra.mxu0 %v139
    %173 = vmatprep.subr.mxu0 0.0
    %174 = vmatpush1.msra.mxu0 %v140
    %175 = vmatprep.subr.mxu0 0.0
    %176 = vmatpush1.msra.mxu0 %v141
    %177 = vmatprep.subr.mxu0 0.0
    %178 = vmatpush1.msra.mxu0 %v142
    %179 = vmatprep.subr.mxu0 0.0
    %180 = vmatpush1.msra.mxu0 %v143
    %181 = vmatprep.subr.mxu0 0.0
    %182 = vmatpush1.msra.mxu0 %v144
    %183 = vmatprep.subr.mxu0 0.0
    %184 = vmatpush1.msra.mxu0 %v145
    %185 = vmatprep.subr.mxu0 0.0
    %186 = vmatpush1.msra.mxu0 0.0
    %187 = vmatprep.subr.mxu0 0.0
    %188 = vmatpush1.msra.mxu0 0.0
    %189 = vmatprep.subr.mxu0 0.0
    %190 = vmatpush1.msra.mxu0 0.0
    %191 = vmatprep.subr.mxu0 0.0
    %192 = vmatpush1.msra.mxu0 0.0
    %193 = vmatprep.subr.mxu0 0.0
    %194 = vmatpush1.msra.mxu0 0.0
    %195 = vmatprep.subr.mxu0 0.0
    %196 = vmatpush1.msra.mxu0 0.0
    %197 = vmatprep.subr.mxu0 0.0
    %198 = vmatpush1.msra.mxu0 0.0
    %199 = vmatprep.subr.mxu0 0.0
    %200 = vmatpush1.msra.mxu0 0.0
    %201 = vmatprep.subr.mxu0 0.0
    %202 = vmatpush1.msra.mxu0 0.0
    %203 = vmatprep.subr.mxu0 0.0
    %204 = vmatpush1.msra.mxu0 0.0
    %205 = vmatprep.subr.mxu0 0.0
    %206 = vmatpush1.msra.mxu0 0.0
    %207 = vmatprep.subr.mxu0 0.0
    %208 = vmatpush1.msra.mxu0 0.0
    %209 = vmatprep.subr.mxu0 0.0
    %210 = vmatpush1.msra.mxu0 0.0
    %211 = vmatprep.subr.mxu0 0.0
    %212 = vmatpush1.msra.mxu0 0.0
    %213 = vmatprep.subr.mxu0 0.0
    %214 = vmatpush1.msra.mxu0 0.0
    %215 = vmatprep.subr.mxu0 0.0
    %216 = vmatpush1.msra.mxu0 0.0
    %217 = vmatprep.mubr.f32.mxu0 0.0
    %218 = vmatmul.mubr.f32.gmra.mrb[0].mxu0 %v128
    %v219 = vpop.f32.mrb[0].mxu0
    %v220 = vadd.f32 %v151, %v219
    %v221 = vpop.f32.mrb[0].mxu0
    %222 = vmatprep.mubr.f32.mxu0 0.0
    %223 = vmatmul.mubr.f32.gmra.mrb[0].mxu0 %v129
    %v224 = vpop.f32.mrb[0].mxu0
    %v225 = vadd.f32 %v151, %v224
    %v226 = vpop.f32.mrb[0].mxu0
    %227 = vdwg.mxu0
    %228 = vst.msk [vmem:[#allocation2] sm:$0xff] %vm34, %v220
    %229 = vst.msk [vmem:[#allocation2 + $0x8] sm:$0xff] %vm34, %v225
    // Predicated region
    $region22: #{tpu_custom_call.1} parent=1 // pred_check
      _
    $region23: #{tpu_custom_call.1} parent=1 // pred_check_branch
      %231 = sbr.rel (0) target = $region25
    $region24: #{tpu_custom_call.1} parent=1 // pred_region
      %s233 = ssub.s32 256, 256
      %234 = vsyncadd [#allocation3], %s233
      %s235 = sshll.u32 [#allocation2], 4
      %s236 = int_to_ptr.vmem [resolvable:$true] %s235
      %241 = dma.vmem_to_hbm [thread:$0]  %s236, 256, %s5, [#allocation3], 128, 128, 8
    $region25: #{tpu_custom_call.1} parent=1 // pred_fallthru
      _
    // Predicated region
    $region26: #{tpu_custom_call.1} parent=1 // pred_check
      _
    $region27: #{tpu_custom_call.1} parent=1 // pred_check_branch
      %243 = sbr.rel (0) target = $region29
    $region28: #{tpu_custom_call.1} parent=1 // pred_region
      %244 = dma.done [#allocation3], 256
    $region29: #{tpu_custom_call.1} parent=1 // pred_fallthru
      _
    %245 = vsyncpa [#allocation3], 1

</llo_original>
